<compile_context>
chip_gen: v6e
topology: v6e:2x2x1
jax: 0.10.0
libtpu: 0.0.40
codegen_flags: <defaults>
</compile_context>

<pallas_src>
import math
from functools import partial

import numpy as np
import jax
import jax.numpy as jnp
from jax import lax
from jax.experimental import pallas as pl
from jax.experimental.pallas import tpu as pltpu


def _round_up(x, m):
    return ((x + m - 1) // m) * m


def _graph_mha_kernel(q_ref, k_ref, v_ref, adj_ref, out_ref, acc_ref, z_ref,
                      *, num_heads, head_dim):
    """Grid = (dst-row tiles ["parallel"], src-node tiles ["arbitrary"]).

    q_ref   : (TM, H*D) f32   pre-scaled Q rows of this dst tile (resident across src axis)
    k_ref   : (TN, H*D) f32   K rows of this src tile, head-major columns
    v_ref   : (TN, H*D) f32   V rows of this src tile, head-major columns
    adj_ref : (TM, TN)  int8  adj[v, u] = 1 iff edge u -> v
    out_ref : (TM, H*D)       wV / z, head-major columns (written on last src tile)
    acc_ref : (TM, H*D) f32   VMEM scratch, running wV
    z_ref   : (TM, H)   f32   VMEM scratch, running z
    """
    H, D = num_heads, head_dim
    j = pl.program_id(1)

    @pl.when(j == 0)
    def _init():
        acc_ref[...] = jnp.zeros_like(acc_ref)
        z_ref[...] = jnp.zeros_like(z_ref)

    q = q_ref[...]
    k = k_ref[...]
    v = v_ref[...]
    adj = adj_ref[...].astype(jnp.float32)                                # (TM, TN)

    for hi in range(H):                    # static unroll; H is small
        sl = slice(hi * D, (hi + 1) * D)
        # s[v, u] = Q_h[v] . K_h[u]  (contract dim 1 vs dim 1 -> no k transpose / XLU)
        s = lax.dot_general(q[:, sl], k[:, sl], (((1,), (1,)), ((), ())),
                            preferred_element_type=jnp.float32)           # (TM, TN)
        e = jnp.exp(jnp.clip(s, -5.0, 5.0)) * adj                         # masked edge scores
        acc_ref[:, sl] += jnp.dot(e, v[:, sl],
                                  preferred_element_type=jnp.float32)     # (TM, D)
        z_ref[:, hi:hi + 1] += jnp.sum(e, axis=-1, keepdims=True)         # (TM, 1)

    @pl.when(j == pl.num_programs(1) - 1)
    def _finalize():
        for hi in range(H):
            sl = slice(hi * D, (hi + 1) * D)
            # NOTE: matches PyTorch exactly -> a zero in-degree node yields 0/0 (NaN).
            inv_z = pl.reciprocal(z_ref[:, hi:hi + 1], approx=False)
            out_ref[:, sl] = (acc_ref[:, sl] * inv_z).astype(out_ref.dtype)


def multi_head_attention(h, adj_t, Wq, bq, Wk, bk, Wv, bv, *,
                         tile_m=256, tile_n=1024):
    """h: (N, in_dim); adj_t: (N, N) int8 with adj_t[v, u] = 1 iff edge u -> v;
    Wq/Wk/Wv: (H, in_dim, D); bq/bk/bv: (H, 1, D).  Returns head_out: (N, H, D) f32."""
    N, in_dim = h.shape
    H, _, D = Wq.shape
    HD = H * D
    f32 = jnp.float32
    hp = lax.Precision.HIGHEST

    # ---- projections hoisted out of the kernel (done ONCE, not per row tile) ----
    def pack_w(W):
        return jnp.transpose(W, (1, 0, 2)).reshape(in_dim, HD).astype(f32)

    def pack_b(b):
        return b.reshape(1, HD).astype(f32)

    scale = 1.0 / math.sqrt(float(D))
    h32 = h.astype(f32)
    q = (jnp.dot(h32, pack_w(Wq), precision=hp) + pack_b(bq)) * scale      # (N, HD)
    k = jnp.dot(h32, pack_w(Wk), precision=hp) + pack_b(bk)                # (N, HD)
    v = jnp.dot(h32, pack_w(Wv), precision=hp) + pack_b(bv)                # (N, HD)
    # TODO(synk): cast q/k/v to bf16 on v6e/v7x (f32 accumulate stays in-kernel) once
    # callers accept the relaxed (~1e-2) tolerance.

    # ---- tile sizing: 128-aligned when tiled; >=2 row tiles for v7x megacore ----
    if N > tile_m:
        tm = tile_m
    elif N >= 256:
        tm = _round_up((N + 1) // 2, 128)
    else:
        tm = _round_up(N, 8)
    tn = tile_n if N > tile_n else _round_up(N, 8)

    nvp = _round_up(N, tm)       # padded destination (row) count
    nup = _round_up(N, tn)       # padded source count
    # Zero-pad so no OOB/garbage lanes ever reach exp or the accumulators:
    # padded K rows are exactly 0 -> s = 0 -> e = 1 * adj(=0) = 0.
    q = jnp.pad(q, ((0, nvp - N), (0, 0)))
    k = jnp.pad(k, ((0, nup - N), (0, 0)))
    v = jnp.pad(v, ((0, nup - N), (0, 0)))
    adj_p = jnp.pad(adj_t.astype(jnp.int8), ((0, nvp - N), (0, nup - N)))

    grid = (nvp // tm, nup // tn)
    kernel = partial(_graph_mha_kernel, num_heads=H, head_dim=D)

    out = pl.pallas_call(
        kernel,
        out_shape=jax.ShapeDtypeStruct((nvp, HD), f32),
        grid_spec=pltpu.PrefetchScalarGridSpec(
            num_scalar_prefetch=0,
            grid=grid,
            in_specs=[
                pl.BlockSpec((tm, HD), lambda i, j: (i, 0)),   # Q rows (resident over src axis)
                pl.BlockSpec((tn, HD), lambda i, j: (j, 0)),   # K src tile
                pl.BlockSpec((tn, HD), lambda i, j: (j, 0)),   # V src tile
                pl.BlockSpec((tm, tn), lambda i, j: (i, j)),   # adjacency tile (int8)
            ],
            out_specs=pl.BlockSpec((tm, HD), lambda i, j: (i, 0)),
            scratch_shapes=[
                pltpu.VMEM((tm, HD), f32),    # wV accumulator
                pltpu.VMEM((tm, H), f32),     # z accumulator
            ],
        ),
        compiler_params=pltpu.CompilerParams(
            # dst-row tiles are independent -> megacore; src axis is a reduction.
            dimension_semantics=("parallel", "arbitrary"),
            vmem_limit_bytes=48 * 1024 * 1024,   # explicit; fits v7x's 64 MiB with headroom
        ),
    )(q, k, v, adj_p)

    # TODO(synk): for sparse graphs, scalar-prefetch per-(row,src)-block edge counts and
    # skip empty adjacency blocks; bit-pack the mask if adjacency DMA ever dominates.
    # (N, H*D) head-major columns -> (N, H, D): free reshape, matches PyTorch layout.
    return out[:N].reshape(N, H, D)


def _reference(h, adj_t, Wq, bq, Wk, bk, Wv, bv):
    """Pure-JAX reference of the original PyTorch math, for a correctness check."""
    D = Wq.shape[-1]
    hp = lax.Precision.HIGHEST
    q = jnp.einsum('ni,hid->hnd', h, Wq, precision=hp) + bq
    k = jnp.einsum('ni,hid->hnd', h, Wk, precision=hp) + bk
    v = jnp.einsum('ni,hid->hnd', h, Wv, precision=hp) + bv
    s = jnp.einsum('hvd,hud->hvu', q, k, precision=hp) / jnp.sqrt(jnp.float32(D))
    e = jnp.exp(jnp.clip(s, -5.0, 5.0)) * adj_t.astype(jnp.float32)[None]   # (H, Nv, Nu)
    wv = jnp.einsum('hvu,hud->hvd', e, v, precision=hp)
    z = jnp.sum(e, axis=-1, keepdims=True)
    return jnp.transpose(wv / z, (1, 0, 2))                                 # (N, H, D)


if __name__ == "__main__":
    # Small shapes consistent with the module: in_dim=32, out_dim=16, num_heads=4, N=16.
    N, in_dim, out_dim, num_heads = 16, 32, 16, 4
    use_bias = True

    key = jax.random.PRNGKey(0)
    k_h, k_wq, k_wk, k_wv, k_bq, k_bk, k_bv, k_adj = jax.random.split(key, 8)

    h = jax.random.normal(k_h, (N, in_dim), dtype=jnp.float32)

    # nn.Linear(in_dim, out_dim*H): weight (out_dim*H, in_dim), bias (out_dim*H,).
    # Stored pre-transposed and split per head: (H, in_dim, out_dim), (H, 1, out_dim).
    def make_w(k):
        w = jax.random.normal(k, (out_dim * num_heads, in_dim), dtype=jnp.float32) * 0.1
        return jnp.transpose(w.reshape(num_heads, out_dim, in_dim), (0, 2, 1))

    def make_b(k):
        if not use_bias:
            return jnp.zeros((num_heads, 1, out_dim), dtype=jnp.float32)
        b = jax.random.normal(k, (out_dim * num_heads,), dtype=jnp.float32) * 0.1
        return b.reshape(num_heads, 1, out_dim)

    Wq, Wk, Wv = make_w(k_wq), make_w(k_wk), make_w(k_wv)
    bq, bk, bv = make_b(k_bq), make_b(k_bk), make_b(k_bv)

    # Random directed graph; self-loops guarantee every node has >=1 incoming edge (z > 0).
    adj_src_dst = (jax.random.uniform(k_adj, (N, N)) < 0.3).astype(jnp.float32)
    adj_src_dst = jnp.maximum(adj_src_dst, jnp.eye(N, dtype=jnp.float32))
    adj_t = adj_src_dst.T.astype(jnp.int8)            # adj_t[v, u] = edge u -> v (int8 mask)

    out = multi_head_attention(h, adj_t, Wq, bq, Wk, bk, Wv, bv)
    out = jax.block_until_ready(out)

    ref = _reference(h, adj_t, Wq, bq, Wk, bk, Wv, bv)
    np.testing.assert_allclose(np.asarray(out), np.asarray(ref), rtol=1e-4, atol=1e-4)

    print("KERNEL_OK")
</pallas_src>

<mosaic_0001>
module attributes {stable_mosaic.version = 11 : i64} {
  func.func @_graph_mha_kernel(%arg0: i32, %arg1: i32, %arg2: memref<16x64xf32, #tpu.memory_space<vmem>>, %arg3: memref<16x64xf32, #tpu.memory_space<vmem>>, %arg4: memref<16x64xf32, #tpu.memory_space<vmem>>, %arg5: memref<16x16xi8, #tpu.memory_space<vmem>>, %arg6: memref<16x64xf32, #tpu.memory_space<vmem>>, %arg7: memref<16x64xf32, #tpu.memory_space<vmem>>, %arg8: memref<16x4xf32, #tpu.memory_space<vmem>>) attributes {dimension_semantics = [#tpu.dimension_semantics<parallel>, #tpu.dimension_semantics<arbitrary>], iteration_bounds = array<i64: 1, 1>, scalar_prefetch = 0 : i64, scratch_operands = 2 : i64, tpu.core_type = #tpu.core_type<tc>, window_params = [{transform_indices = @transform_0, window_bounds = array<i64: 16, 64>}, {transform_indices = @transform_1, window_bounds = array<i64: 16, 64>}, {transform_indices = @transform_2, window_bounds = array<i64: 16, 64>}, {transform_indices = @transform_3, window_bounds = array<i64: 16, 16>}, {transform_indices = @transform_4, window_bounds = array<i64: 16, 64>}]} {
    %c0_i32 = arith.constant 0 : i32
    %0 = arith.cmpi eq, %arg1, %c0_i32 : i32
    %1 = arith.extui %0 : i1 to i32
    %c0_i32_0 = arith.constant 0 : i32
    %2 = arith.cmpi ne, %1, %c0_i32_0 : i32
    scf.if %2 {
      %cst_55 = arith.constant 0.000000e+00 : f32
      %87 = vector.broadcast %cst_55 : f32 to vector<16x64xf32>
      %c0_56 = arith.constant 0 : index
      %c0_57 = arith.constant 0 : index
      %88 = vector.load %arg7[%c0_56, %c0_57] : memref<16x64xf32, #tpu.memory_space<vmem>>, vector<16x64xf32>
      tpu.vector_store %arg7[%c0_56, %c0_57], %87 {strides = array<i32>} : memref<16x64xf32, #tpu.memory_space<vmem>>, vector<16x64xf32>,
      %cst_58 = arith.constant 0.000000e+00 : f32
      %89 = vector.broadcast %cst_58 : f32 to vector<16x4xf32>
      %c0_59 = arith.constant 0 : index
      %c0_60 = arith.constant 0 : index
      %90 = vector.load %arg8[%c0_59, %c0_60] : memref<16x4xf32, #tpu.memory_space<vmem>>, vector<16x4xf32>
      tpu.vector_store %arg8[%c0_59, %c0_60], %89 {strides = array<i32>} : memref<16x4xf32, #tpu.memory_space<vmem>>, vector<16x4xf32>,
    } else {
    }
    %c0 = arith.constant 0 : index
    %c0_1 = arith.constant 0 : index
    %3 = vector.load %arg2[%c0, %c0_1] : memref<16x64xf32, #tpu.memory_space<vmem>>, vector<16x64xf32>
    %c0_2 = arith.constant 0 : index
    %c0_3 = arith.constant 0 : index
    %4 = vector.load %arg3[%c0_2, %c0_3] : memref<16x64xf32, #tpu.memory_space<vmem>>, vector<16x64xf32>
    %c0_4 = arith.constant 0 : index
    %c0_5 = arith.constant 0 : index
    %5 = vector.load %arg4[%c0_4, %c0_5] : memref<16x64xf32, #tpu.memory_space<vmem>>, vector<16x64xf32>
    %c0_6 = arith.constant 0 : index
    %c0_7 = arith.constant 0 : index
    %6 = vector.load %arg5[%c0_6, %c0_7] : memref<16x16xi8, #tpu.memory_space<vmem>>, vector<16x16xi8>
    %7 = arith.sitofp %6 : vector<16x16xi8> to vector<16x16xf32>
    %8 = vector.extract_strided_slice %3 {offsets = [0, 0], sizes = [16, 16], strides = [1, 1]} : vector<16x64xf32> to vector<16x16xf32>
    %9 = vector.extract_strided_slice %4 {offsets = [0, 0], sizes = [16, 16], strides = [1, 1]} : vector<16x64xf32> to vector<16x16xf32>
    %cst = arith.constant dense<0.000000e+00> : vector<16x16xf32>
    %10 = tpu.matmul %8, %9, %cst {dimension_numbers = #tpu.dot_dimension_numbers<[1], [1], [0], [0], [0, 0, 1, 0], [], []>} : vector<16x16xf32>, vector<16x16xf32>, vector<16x16xf32> -> vector<16x16xf32>
    %cst_8 = arith.constant -5.000000e+00 : f32
    %cst_9 = arith.constant 5.000000e+00 : f32
    %11 = vector.broadcast %cst_8 : f32 to vector<16x16xf32>
    %12 = arith.maximumf %11, %10 : vector<16x16xf32>
    %13 = vector.broadcast %cst_9 : f32 to vector<16x16xf32>
    %14 = arith.minimumf %13, %12 : vector<16x16xf32>
    %15 = math.exp %14 : vector<16x16xf32>
    %16 = arith.mulf %15, %7 : vector<16x16xf32>
    %c0_10 = arith.constant 0 : index
    %c0_11 = arith.constant 0 : index
    %17 = vector.load %arg7[%c0_10, %c0_11] : memref<16x64xf32, #tpu.memory_space<vmem>>, vector<16x16xf32>
    %18 = vector.extract_strided_slice %5 {offsets = [0, 0], sizes = [16, 16], strides = [1, 1]} : vector<16x64xf32> to vector<16x16xf32>
    %cst_12 = arith.constant dense<0.000000e+00> : vector<16x16xf32>
    %19 = tpu.matmul %16, %18, %cst_12 {dimension_numbers = #tpu.dot_dimension_numbers<[1], [0], [0], [1], [0, 0, 1, 1], [], []>} : vector<16x16xf32>, vector<16x16xf32>, vector<16x16xf32> -> vector<16x16xf32>
    %20 = arith.addf %17, %19 : vector<16x16xf32>
    %c0_13 = arith.constant 0 : index
    %c0_14 = arith.constant 0 : index
    %21 = vector.load %arg7[%c0_13, %c0_14] : memref<16x64xf32, #tpu.memory_space<vmem>>, vector<16x16xf32>
    tpu.vector_store %arg7[%c0_13, %c0_14], %20 {strides = array<i32>} : memref<16x64xf32, #tpu.memory_space<vmem>>, vector<16x16xf32>,
    %c0_15 = arith.constant 0 : index
    %c0_16 = arith.constant 0 : index
    %22 = vector.load %arg8[%c0_15, %c0_16] : memref<16x4xf32, #tpu.memory_space<vmem>>, vector<16x1xf32>
    %cst_17 = arith.constant dense<0.000000e+00> : vector<16xf32>
    %23 = vector.multi_reduction <add>, %16, %cst_17 [1] : vector<16x16xf32> to vector<16xf32>
    %24 = vector.shape_cast %23 : vector<16xf32> to vector<16x1xf32>
    %25 = arith.addf %22, %24 : vector<16x1xf32>
    %c0_18 = arith.constant 0 : index
    %c0_19 = arith.constant 0 : index
    %26 = vector.load %arg8[%c0_18, %c0_19] : memref<16x4xf32, #tpu.memory_space<vmem>>, vector<16x1xf32>
    tpu.vector_store %arg8[%c0_18, %c0_19], %25 {strides = array<i32>} : memref<16x4xf32, #tpu.memory_space<vmem>>, vector<16x1xf32>,
    %27 = vector.extract_strided_slice %3 {offsets = [0, 16], sizes = [16, 16], strides = [1, 1]} : vector<16x64xf32> to vector<16x16xf32>
    %28 = vector.extract_strided_slice %4 {offsets = [0, 16], sizes = [16, 16], strides = [1, 1]} : vector<16x64xf32> to vector<16x16xf32>
    %cst_20 = arith.constant dense<0.000000e+00> : vector<16x16xf32>
    %29 = tpu.matmul %27, %28, %cst_20 {dimension_numbers = #tpu.dot_dimension_numbers<[1], [1], [0], [0], [0, 0, 1, 0], [], []>} : vector<16x16xf32>, vector<16x16xf32>, vector<16x16xf32> -> vector<16x16xf32>
    %cst_21 = arith.constant -5.000000e+00 : f32
    %cst_22 = arith.constant 5.000000e+00 : f32
    %30 = vector.broadcast %cst_21 : f32 to vector<16x16xf32>
    %31 = arith.maximumf %30, %29 : vector<16x16xf32>
    %32 = vector.broadcast %cst_22 : f32 to vector<16x16xf32>
    %33 = arith.minimumf %32, %31 : vector<16x16xf32>
    %34 = math.exp %33 : vector<16x16xf32>
    %35 = arith.mulf %34, %7 : vector<16x16xf32>
    %c0_23 = arith.constant 0 : index
    %c16 = arith.constant 16 : index
    %36 = vector.load %arg7[%c0_23, %c16] : memref<16x64xf32, #tpu.memory_space<vmem>>, vector<16x16xf32>
    %37 = vector.extract_strided_slice %5 {offsets = [0, 16], sizes = [16, 16], strides = [1, 1]} : vector<16x64xf32> to vector<16x16xf32>
    %cst_24 = arith.constant dense<0.000000e+00> : vector<16x16xf32>
    %38 = tpu.matmul %35, %37, %cst_24 {dimension_numbers = #tpu.dot_dimension_numbers<[1], [0], [0], [1], [0, 0, 1, 1], [], []>} : vector<16x16xf32>, vector<16x16xf32>, vector<16x16xf32> -> vector<16x16xf32>
    %39 = arith.addf %36, %38 : vector<16x16xf32>
    %c0_25 = arith.constant 0 : index
    %c16_26 = arith.constant 16 : index
    %40 = vector.load %arg7[%c0_25, %c16_26] : memref<16x64xf32, #tpu.memory_space<vmem>>, vector<16x16xf32>
    tpu.vector_store %arg7[%c0_25, %c16_26], %39 {strides = array<i32>} : memref<16x64xf32, #tpu.memory_space<vmem>>, vector<16x16xf32>,
    %c0_27 = arith.constant 0 : index
    %c1 = arith.constant 1 : index
    %41 = vector.load %arg8[%c0_27, %c1] : memref<16x4xf32, #tpu.memory_space<vmem>>, vector<16x1xf32>
    %cst_28 = arith.constant dense<0.000000e+00> : vector<16xf32>
    %42 = vector.multi_reduction <add>, %35, %cst_28 [1] : vector<16x16xf32> to vector<16xf32>
    %43 = vector.shape_cast %42 : vector<16xf32> to vector<16x1xf32>
    %44 = arith.addf %41, %43 : vector<16x1xf32>
    %c0_29 = arith.constant 0 : index
    %c1_30 = arith.constant 1 : index
    %45 = vector.load %arg8[%c0_29, %c1_30] : memref<16x4xf32, #tpu.memory_space<vmem>>, vector<16x1xf32>
    tpu.vector_store %arg8[%c0_29, %c1_30], %44 {strides = array<i32>} : memref<16x4xf32, #tpu.memory_space<vmem>>, vector<16x1xf32>,
    %46 = vector.extract_strided_slice %3 {offsets = [0, 32], sizes = [16, 16], strides = [1, 1]} : vector<16x64xf32> to vector<16x16xf32>
    %47 = vector.extract_strided_slice %4 {offsets = [0, 32], sizes = [16, 16], strides = [1, 1]} : vector<16x64xf32> to vector<16x16xf32>
    %cst_31 = arith.constant dense<0.000000e+00> : vector<16x16xf32>
    %48 = tpu.matmul %46, %47, %cst_31 {dimension_numbers = #tpu.dot_dimension_numbers<[1], [1], [0], [0], [0, 0, 1, 0], [], []>} : vector<16x16xf32>, vector<16x16xf32>, vector<16x16xf32> -> vector<16x16xf32>
    %cst_32 = arith.constant -5.000000e+00 : f32
    %cst_33 = arith.constant 5.000000e+00 : f32
    %49 = vector.broadcast %cst_32 : f32 to vector<16x16xf32>
    %50 = arith.maximumf %49, %48 : vector<16x16xf32>
    %51 = vector.broadcast %cst_33 : f32 to vector<16x16xf32>
    %52 = arith.minimumf %51, %50 : vector<16x16xf32>
    %53 = math.exp %52 : vector<16x16xf32>
    %54 = arith.mulf %53, %7 : vector<16x16xf32>
    %c0_34 = arith.constant 0 : index
    %c32 = arith.constant 32 : index
    %55 = vector.load %arg7[%c0_34, %c32] : memref<16x64xf32, #tpu.memory_space<vmem>>, vector<16x16xf32>
    %56 = vector.extract_strided_slice %5 {offsets = [0, 32], sizes = [16, 16], strides = [1, 1]} : vector<16x64xf32> to vector<16x16xf32>
    %cst_35 = arith.constant dense<0.000000e+00> : vector<16x16xf32>
    %57 = tpu.matmul %54, %56, %cst_35 {dimension_numbers = #tpu.dot_dimension_numbers<[1], [0], [0], [1], [0, 0, 1, 1], [], []>} : vector<16x16xf32>, vector<16x16xf32>, vector<16x16xf32> -> vector<16x16xf32>
    %58 = arith.addf %55, %57 : vector<16x16xf32>
    %c0_36 = arith.constant 0 : index
    %c32_37 = arith.constant 32 : index
    %59 = vector.load %arg7[%c0_36, %c32_37] : memref<16x64xf32, #tpu.memory_space<vmem>>, vector<16x16xf32>
    tpu.vector_store %arg7[%c0_36, %c32_37], %58 {strides = array<i32>} : memref<16x64xf32, #tpu.memory_space<vmem>>, vector<16x16xf32>,
    %c0_38 = arith.constant 0 : index
    %c2 = arith.constant 2 : index
    %60 = vector.load %arg8[%c0_38, %c2] : memref<16x4xf32, #tpu.memory_space<vmem>>, vector<16x1xf32>
    %cst_39 = arith.constant dense<0.000000e+00> : vector<16xf32>
    %61 = vector.multi_reduction <add>, %54, %cst_39 [1] : vector<16x16xf32> to vector<16xf32>
    %62 = vector.shape_cast %61 : vector<16xf32> to vector<16x1xf32>
    %63 = arith.addf %60, %62 : vector<16x1xf32>
    %c0_40 = arith.constant 0 : index
    %c2_41 = arith.constant 2 : index
    %64 = vector.load %arg8[%c0_40, %c2_41] : memref<16x4xf32, #tpu.memory_space<vmem>>, vector<16x1xf32>
    tpu.vector_store %arg8[%c0_40, %c2_41], %63 {strides = array<i32>} : memref<16x4xf32, #tpu.memory_space<vmem>>, vector<16x1xf32>,
    %65 = vector.extract_strided_slice %3 {offsets = [0, 48], sizes = [16, 16], strides = [1, 1]} : vector<16x64xf32> to vector<16x16xf32>
    %66 = vector.extract_strided_slice %4 {offsets = [0, 48], sizes = [16, 16], strides = [1, 1]} : vector<16x64xf32> to vector<16x16xf32>
    %cst_42 = arith.constant dense<0.000000e+00> : vector<16x16xf32>
    %67 = tpu.matmul %65, %66, %cst_42 {dimension_numbers = #tpu.dot_dimension_numbers<[1], [1], [0], [0], [0, 0, 1, 0], [], []>} : vector<16x16xf32>, vector<16x16xf32>, vector<16x16xf32> -> vector<16x16xf32>
    %cst_43 = arith.constant -5.000000e+00 : f32
    %cst_44 = arith.constant 5.000000e+00 : f32
    %68 = vector.broadcast %cst_43 : f32 to vector<16x16xf32>
    %69 = arith.maximumf %68, %67 : vector<16x16xf32>
    %70 = vector.broadcast %cst_44 : f32 to vector<16x16xf32>
    %71 = arith.minimumf %70, %69 : vector<16x16xf32>
    %72 = math.exp %71 : vector<16x16xf32>
    %73 = arith.mulf %72, %7 : vector<16x16xf32>
    %c0_45 = arith.constant 0 : index
    %c48 = arith.constant 48 : index
    %74 = vector.load %arg7[%c0_45, %c48] : memref<16x64xf32, #tpu.memory_space<vmem>>, vector<16x16xf32>
    %75 = vector.extract_strided_slice %5 {offsets = [0, 48], sizes = [16, 16], strides = [1, 1]} : vector<16x64xf32> to vector<16x16xf32>
    %cst_46 = arith.constant dense<0.000000e+00> : vector<16x16xf32>
    %76 = tpu.matmul %73, %75, %cst_46 {dimension_numbers = #tpu.dot_dimension_numbers<[1], [0], [0], [1], [0, 0, 1, 1], [], []>} : vector<16x16xf32>, vector<16x16xf32>, vector<16x16xf32> -> vector<16x16xf32>
    %77 = arith.addf %74, %76 : vector<16x16xf32>
    %c0_47 = arith.constant 0 : index
    %c48_48 = arith.constant 48 : index
    %78 = vector.load %arg7[%c0_47, %c48_48] : memref<16x64xf32, #tpu.memory_space<vmem>>, vector<16x16xf32>
    tpu.vector_store %arg7[%c0_47, %c48_48], %77 {strides = array<i32>} : memref<16x64xf32, #tpu.memory_space<vmem>>, vector<16x16xf32>,
    %c0_49 = arith.constant 0 : index
    %c3 = arith.constant 3 : index
    %79 = vector.load %arg8[%c0_49, %c3] : memref<16x4xf32, #tpu.memory_space<vmem>>, vector<16x1xf32>
    %cst_50 = arith.constant dense<0.000000e+00> : vector<16xf32>
    %80 = vector.multi_reduction <add>, %73, %cst_50 [1] : vector<16x16xf32> to vector<16xf32>
    %81 = vector.shape_cast %80 : vector<16xf32> to vector<16x1xf32>
    %82 = arith.addf %79, %81 : vector<16x1xf32>
    %c0_51 = arith.constant 0 : index
    %c3_52 = arith.constant 3 : index
    %83 = vector.load %arg8[%c0_51, %c3_52] : memref<16x4xf32, #tpu.memory_space<vmem>>, vector<16x1xf32>
    tpu.vector_store %arg8[%c0_51, %c3_52], %82 {strides = array<i32>} : memref<16x4xf32, #tpu.memory_space<vmem>>, vector<16x1xf32>,
    %c0_i32_53 = arith.constant 0 : i32
    %84 = arith.cmpi eq, %arg1, %c0_i32_53 : i32
    %85 = arith.extui %84 : i1 to i32
    %c0_i32_54 = arith.constant 0 : i32
    %86 = arith.cmpi ne, %85, %c0_i32_54 : i32
    scf.if %86 {
      %c0_55 = arith.constant 0 : index
      %c0_56 = arith.constant 0 : index
      %87 = vector.load %arg8[%c0_55, %c0_56] : memref<16x4xf32, #tpu.memory_space<vmem>>, vector<16x1xf32>
      %88 = tpu.reciprocal %87 : vector<16x1xf32> -> vector<16x1xf32>
      %c0_57 = arith.constant 0 : index
      %c0_58 = arith.constant 0 : index
      %89 = vector.load %arg7[%c0_57, %c0_58] : memref<16x64xf32, #tpu.memory_space<vmem>>, vector<16x16xf32>
      %90 = vector.broadcast %88 : vector<16x1xf32> to vector<16x16xf32>
      %91 = arith.mulf %89, %90 : vector<16x16xf32>
      %c0_59 = arith.constant 0 : index
      %c0_60 = arith.constant 0 : index
      %92 = vector.load %arg6[%c0_59, %c0_60] : memref<16x64xf32, #tpu.memory_space<vmem>>, vector<16x16xf32>
      tpu.vector_store %arg6[%c0_59, %c0_60], %91 {strides = array<i32>} : memref<16x64xf32, #tpu.memory_space<vmem>>, vector<16x16xf32>,
      %c0_61 = arith.constant 0 : index
      %c1_62 = arith.constant 1 : index
      %93 = vector.load %arg8[%c0_61, %c1_62] : memref<16x4xf32, #tpu.memory_space<vmem>>, vector<16x1xf32>
      %94 = tpu.reciprocal %93 : vector<16x1xf32> -> vector<16x1xf32>
      %c0_63 = arith.constant 0 : index
      %c16_64 = arith.constant 16 : index
      %95 = vector.load %arg7[%c0_63, %c16_64] : memref<16x64xf32, #tpu.memory_space<vmem>>, vector<16x16xf32>
      %96 = vector.broadcast %94 : vector<16x1xf32> to vector<16x16xf32>
      %97 = arith.mulf %95, %96 : vector<16x16xf32>
      %c0_65 = arith.constant 0 : index
      %c16_66 = arith.constant 16 : index
      %98 = vector.load %arg6[%c0_65, %c16_66] : memref<16x64xf32, #tpu.memory_space<vmem>>, vector<16x16xf32>
      tpu.vector_store %arg6[%c0_65, %c16_66], %97 {strides = array<i32>} : memref<16x64xf32, #tpu.memory_space<vmem>>, vector<16x16xf32>,
      %c0_67 = arith.constant 0 : index
      %c2_68 = arith.constant 2 : index
      %99 = vector.load %arg8[%c0_67, %c2_68] : memref<16x4xf32, #tpu.memory_space<vmem>>, vector<16x1xf32>
      %100 = tpu.reciprocal %99 : vector<16x1xf32> -> vector<16x1xf32>
      %c0_69 = arith.constant 0 : index
      %c32_70 = arith.constant 32 : index
      %101 = vector.load %arg7[%c0_69, %c32_70] : memref<16x64xf32, #tpu.memory_space<vmem>>, vector<16x16xf32>
      %102 = vector.broadcast %100 : vector<16x1xf32> to vector<16x16xf32>
      %103 = arith.mulf %101, %102 : vector<16x16xf32>
      %c0_71 = arith.constant 0 : index
      %c32_72 = arith.constant 32 : index
      %104 = vector.load %arg6[%c0_71, %c32_72] : memref<16x64xf32, #tpu.memory_space<vmem>>, vector<16x16xf32>
      tpu.vector_store %arg6[%c0_71, %c32_72], %103 {strides = array<i32>} : memref<16x64xf32, #tpu.memory_space<vmem>>, vector<16x16xf32>,
      %c0_73 = arith.constant 0 : index
      %c3_74 = arith.constant 3 : index
      %105 = vector.load %arg8[%c0_73, %c3_74] : memref<16x4xf32, #tpu.memory_space<vmem>>, vector<16x1xf32>
      %106 = tpu.reciprocal %105 : vector<16x1xf32> -> vector<16x1xf32>
      %c0_75 = arith.constant 0 : index
      %c48_76 = arith.constant 48 : index
      %107 = vector.load %arg7[%c0_75, %c48_76] : memref<16x64xf32, #tpu.memory_space<vmem>>, vector<16x16xf32>
      %108 = vector.broadcast %106 : vector<16x1xf32> to vector<16x16xf32>
      %109 = arith.mulf %107, %108 : vector<16x16xf32>
      %c0_77 = arith.constant 0 : index
      %c48_78 = arith.constant 48 : index
      %110 = vector.load %arg6[%c0_77, %c48_78] : memref<16x64xf32, #tpu.memory_space<vmem>>, vector<16x16xf32>
      tpu.vector_store %arg6[%c0_77, %c48_78], %109 {strides = array<i32>} : memref<16x64xf32, #tpu.memory_space<vmem>>, vector<16x16xf32>,
    } else {
    }
    return
  }
  func.func @transform_0(%arg0: i32, %arg1: i32) -> (i32, i32) {
    %c0_i32 = arith.constant 0 : i32
    %c0_i32_0 = arith.constant 0 : i32
    return %arg0, %c0_i32 : i32, i32
  }
  func.func @transform_1(%arg0: i32, %arg1: i32) -> (i32, i32) {
    %c0_i32 = arith.constant 0 : i32
    %c0_i32_0 = arith.constant 0 : i32
    return %arg1, %c0_i32 : i32, i32
  }
  func.func @transform_2(%arg0: i32, %arg1: i32) -> (i32, i32) {
    %c0_i32 = arith.constant 0 : i32
    %c0_i32_0 = arith.constant 0 : i32
    return %arg1, %c0_i32 : i32, i32
  }
  func.func @transform_3(%arg0: i32, %arg1: i32) -> (i32, i32) {
    %c0_i32 = arith.constant 0 : i32
    return %arg0, %arg1 : i32, i32
  }
  func.func @transform_4(%arg0: i32, %arg1: i32) -> (i32, i32) {
    %c0_i32 = arith.constant 0 : i32
    %c0_i32_0 = arith.constant 0 : i32
    return %arg0, %c0_i32 : i32, i32
  }
}

</mosaic_0001>

<llo_original>
// kernel: tpu_custom_call.1
$region0: #{tpu_custom_call.1}
  #allocation0 [shape = 'u32[]', space=smem, size = 0x4, offset = 0x4, fixed_abs, tag = 'smem constant byte address 0x4 - core index']
  #allocation1 [shape = 'u32[144,128]{1,0:T(1,128)}', space=vmem, size = 0x12000, scoped, tag = 'internal scratch']
  #allocation2 [shape = 'f32[16,64]{1,0:T(8,128)}', space=vmem, size = 0x2000, scoped, tag = 'scratch operand']
  #allocation3 [shape = 'f32[16,4]{1,0:T(8,128)}', space=vmem, size = 0x2000, scoped, tag = 'scratch operand']
  %s0 = inlined_call_operand.hbm [shape: f32[16,64], index: 0, kind: input, shape index: {}]
  %s1 = inlined_call_operand.hbm [shape: f32[16,64], index: 1, kind: input, shape index: {}]
  %s2 = inlined_call_operand.hbm [shape: f32[16,64], index: 2, kind: input, shape index: {}]
  %s3 = inlined_call_operand.vmem [shape: s8[16,16], index: 3, kind: input, shape index: {}]
  %s4 = inlined_call_operand.hbm [shape: f32[16,64], index: 4, kind: output, shape index: {}]
  %s5 = sld [smem:[#allocation0]]
  $region46: #{tpu_custom_call.1} parent=0
    _
  %s7 = ssub.s32 1, %s5
  %s8 = scalar_select 0, %s7, %s5
  $region1: #{tpu_custom_call.1} parent=0
    #allocation4 [shape = 'u8[8192]{0}', space=vmem, size = 0x2000, scoped, tag = 'input window, operand 0, single buffered']
    #allocation5 [shape = 's32[1]{0}', space=sflag, size = 0x4, scoped, tag = 'scoped memory for tpu_custom_call.1']
    #allocation6 [shape = 's32[1]{0}', space=sflag, size = 0x4, scoped, tag = 'scoped memory for tpu_custom_call.1']
    #allocation7 [shape = 'u8[8192]{0}', space=vmem, size = 0x2000, scoped, tag = 'input window, operand 1, single buffered']
    #allocation8 [shape = 's32[1]{0}', space=sflag, size = 0x4, scoped, tag = 'scoped memory for tpu_custom_call.1']
    #allocation9 [shape = 'u8[8192]{0}', space=vmem, size = 0x2000, scoped, tag = 'input window, operand 2, single buffered']
    #allocation10 [shape = 'u8[8192]{0}', space=vmem, size = 0x2000, scoped, tag = 'output window, operand 0, single buffered']
    %9 = vsyncpa [#allocation5], 0
    %10 = vsyncpa [#allocation8], 0
    %11 = vsyncpa [#allocation6], 0
    // Predicated region
    $region2: #{tpu_custom_call.1} parent=1 // pred_check
      _
    $region3: #{tpu_custom_call.1} parent=1 // pred_check_branch
      %13 = sbr.rel (0) target = $region5
    $region4: #{tpu_custom_call.1} parent=1 // pred_region
      %s15 = ssub.s32 256, 256
      %16 = vsyncadd [#allocation5], %s15
      %s17 = sshll.u32 [#allocation4], 4
      %s18 = int_to_ptr.vmem [resolvable:$true] %s17
      %23 = dma.hbm_to_vmem [thread:$0]  %s0, 256, %s18, [#allocation5], 128, 128, 8
    $region5: #{tpu_custom_call.1} parent=1 // pred_fallthru
      _
    // Predicated region
    $region6: #{tpu_custom_call.1} parent=1 // pred_check
      _
    $region7: #{tpu_custom_call.1} parent=1 // pred_check_branch
      %25 = sbr.rel (0) target = $region9
    $region8: #{tpu_custom_call.1} parent=1 // pred_region
      %s27 = ssub.s32 256, 256
      %28 = vsyncadd [#allocation8], %s27
      %s29 = sshll.u32 [#allocation7], 4
      %s30 = int_to_ptr.vmem [resolvable:$true] %s29
      %35 = dma.hbm_to_vmem [thread:$0]  %s1, 256, %s30, [#allocation8], 128, 128, 8
    $region9: #{tpu_custom_call.1} parent=1 // pred_fallthru
      _
    // Predicated region
    $region10: #{tpu_custom_call.1} parent=1 // pred_check
      _
    $region11: #{tpu_custom_call.1} parent=1 // pred_check_branch
      %37 = sbr.rel (0) target = $region13
    $region12: #{tpu_custom_call.1} parent=1 // pred_region
      %s39 = ssub.s32 256, 256
      %40 = vsyncadd [#allocation8], %s39
      %s41 = sshll.u32 [#allocation9], 4
      %s42 = int_to_ptr.vmem [resolvable:$true] %s41
      %47 = dma.hbm_to_vmem [thread:$0]  %s2, 256, %s42, [#allocation8], 128, 128, 8
    $region13: #{tpu_custom_call.1} parent=1 // pred_fallthru
      _
    // Predicated region
    $region14: #{tpu_custom_call.1} parent=1 // pred_check
      _
    $region15: #{tpu_custom_call.1} parent=1 // pred_check_branch
      %49 = sbr.rel (0) target = $region17
    $region16: #{tpu_custom_call.1} parent=1 // pred_region
      _
    $region17: #{tpu_custom_call.1} parent=1 // pred_fallthru
      _
    // Predicated region
    $region18: #{tpu_custom_call.1} parent=1 // pred_check
      _
    $region19: #{tpu_custom_call.1} parent=1 // pred_check_branch
      %51 = sbr.rel (0) target = $region21
    $region20: #{tpu_custom_call.1} parent=1 // pred_region
      %52 = dma.done [#allocation5], 256
    $region21: #{tpu_custom_call.1} parent=1 // pred_fallthru
      _
    // Predicated region
    $region22: #{tpu_custom_call.1} parent=1 // pred_check
      _
    $region23: #{tpu_custom_call.1} parent=1 // pred_check_branch
      %54 = sbr.rel (0) target = $region25
    $region24: #{tpu_custom_call.1} parent=1 // pred_region
      %55 = dma.done [#allocation8], 256
    $region25: #{tpu_custom_call.1} parent=1 // pred_fallthru
      _
    // Predicated region
    $region26: #{tpu_custom_call.1} parent=1 // pred_check
      _
    $region27: #{tpu_custom_call.1} parent=1 // pred_check_branch
      %57 = sbr.rel (0) target = $region29
    $region28: #{tpu_custom_call.1} parent=1 // pred_region
      %58 = dma.done [#allocation8], 256
    $region29: #{tpu_custom_call.1} parent=1 // pred_fallthru
      _
    %p59 = scmp.eq.s32.totalorder 0, 0
    // Predicated region
    $region30: #{tpu_custom_call.1} parent=1 // pred_check
      %p60 = pneg %p59
    $region31: #{tpu_custom_call.1} parent=1 // pred_check_branch
      %62 = sbr.rel (%p60) target = $region33
    $region32: #{tpu_custom_call.1} parent=1 // pred_region
      %vm63 = vcmask 523264
      %64 = vst.msk [vmem:[#allocation2] sm:$0xff] %vm63, 0.0
      %65 = vst.msk [vmem:[#allocation2 + $0x8] sm:$0xff] %vm63, 0.0
      %vm66 = vcmask 31744
      %67 = vst.msk [vmem:[#allocation3] sm:$0xff] %vm66, 0.0
      %68 = vst.msk [vmem:[#allocation3 + $0x8] sm:$0xff] %vm66, 0.0
    $region33: #{tpu_custom_call.1} parent=1 // pred_fallthru
      _
    %v69 = vld [vmem:[#allocation4] sm:$0xff]
    %v70 = vld [vmem:[#allocation4 + $0x8] sm:$0xff]
    %v71 = vld [vmem:[#allocation7] sm:$0xff]
    %v72 = vld [vmem:[#allocation7 + $0x8] sm:$0xff]
    %v73 = vld [vmem:[#allocation9] sm:$0xff]
    %v74 = vld [vmem:[#allocation9 + $0x8] sm:$0xff]
    %v75 = vld [vmem:[%s3] sm:$0x3]
    %v76 = vld [vmem:[%s3 + $0x2] sm:$0x3]
    %v77 = vunpack.c.0.s8 %v75
    %v78 = vunpack.c.0.s8 %v76
    %v79 = vcvt.s32.f32 %v77
    %v80 = vcvt.s32.f32 %v78
    %vm81 = vcmask 130048
    %v83 = vsel %vm81, %v69, 0
    %v86 = vsel %vm81, %v70, 0
    %v89 = vsel %vm81, %v71, 0
    %v92 = vsel %vm81, %v72, 0
    %94 = vmatprep.subr.mxu0 0.0
    %95 = vmatpush1.xpose.msra.mxu0 0.0
    %96 = vmatprep.subr.mxu0 0.0
    %97 = vmatpush1.xpose.msra.mxu0 0.0
    %98 = vmatprep.subr.mxu0 0.0
    %99 = vmatpush1.xpose.msra.mxu0 0.0
    %100 = vmatprep.subr.mxu0 0.0
    %101 = vmatpush1.xpose.msra.mxu0 0.0
    %102 = vmatprep.subr.mxu0 0.0
    %103 = vmatpush1.xpose.msra.mxu0 0.0
    %104 = vmatprep.subr.mxu0 0.0
    %105 = vmatpush1.xpose.msra.mxu0 0.0
    %106 = vmatprep.subr.mxu0 0.0
    %107 = vmatpush1.xpose.msra.mxu0 0.0
    %108 = vmatprep.subr.mxu0 0.0
    %109 = vmatpush1.xpose.msra.mxu0 0.0
    %110 = vmatprep.subr.mxu0 0.0
    %111 = vmatpush1.xpose.msra.mxu0 0.0
    %112 = vmatprep.subr.mxu0 0.0
    %113 = vmatpush1.xpose.msra.mxu0 0.0
    %114 = vmatprep.subr.mxu0 0.0
    %115 = vmatpush1.xpose.msra.mxu0 0.0
    %116 = vmatprep.subr.mxu0 0.0
    %117 = vmatpush1.xpose.msra.mxu0 0.0
    %118 = vmatprep.subr.mxu0 0.0
    %119 = vmatpush1.xpose.msra.mxu0 0.0
    %120 = vmatprep.subr.mxu0 0.0
    %121 = vmatpush1.xpose.msra.mxu0 0.0
    %122 = vmatprep.subr.mxu0 0.0
    %123 = vmatpush1.xpose.msra.mxu0 %v92
    %124 = vmatprep.subr.mxu0 0.0
    %125 = vmatpush1.xpose.msra.mxu0 %v89
    %126 = vmatprep.subr.mxu0 0.0
    %127 = vmatpush2.xpose.msra.mxu0 0.0
    %128 = vmatprep.subr.mxu0 0.0
    %129 = vmatpush2.xpose.msra.mxu0 0.0
    %130 = vmatprep.subr.mxu0 0.0
    %131 = vmatpush2.xpose.msra.mxu0 0.0
    %132 = vmatprep.subr.mxu0 0.0
    %133 = vmatpush2.xpose.msra.mxu0 0.0
    %134 = vmatprep.subr.mxu0 0.0
    %135 = vmatpush2.xpose.msra.mxu0 0.0
    %136 = vmatprep.subr.mxu0 0.0
    %137 = vmatpush2.xpose.msra.mxu0 0.0
    %138 = vmatprep.subr.mxu0 0.0
    %139 = vmatpush2.xpose.msra.mxu0 0.0
    %140 = vmatprep.subr.mxu0 0.0
    %141 = vmatpush2.xpose.msra.mxu0 0.0
    %142 = vmatprep.subr.mxu0 0.0
    %143 = vmatpush2.xpose.msra.mxu0 0.0
    %144 = vmatprep.subr.mxu0 0.0
    %145 = vmatpush2.xpose.msra.mxu0 0.0
    %146 = vmatprep.subr.mxu0 0.0
    %147 = vmatpush2.xpose.msra.mxu0 0.0
    %148 = vmatprep.subr.mxu0 0.0
    %149 = vmatpush2.xpose.msra.mxu0 0.0
    %150 = vmatprep.subr.mxu0 0.0
    %151 = vmatpush2.xpose.msra.mxu0 0.0
    %152 = vmatprep.subr.mxu0 0.0
    %153 = vmatpush2.xpose.msra.mxu0 0.0
    %154 = vmatprep.subr.mxu0 0.0
    %155 = vmatpush2.xpose.msra.mxu0 0.0
    %156 = vmatprep.subr.mxu0 0.0
    %157 = vmatpush2.xpose.msra.mxu0 0.0
    %158 = vmatprep.mubr.f32.mxu0 0.0
    %159 = vmatmul.mubr.f32.gmra.mxu0 %v83
    %v160 = vpop.f32.mrf.mxu0
    %v161 = vadd.f32 0.0, %v160
    %v162 = vpop.f32.mrf.mxu0
    %163 = vmatprep.mubr.f32.mxu0 0.0
    %164 = vmatmul.mubr.f32.gmra.mxu0 %v86
    %v165 = vpop.f32.mrf.mxu0
    %v166 = vadd.f32 0.0, %v165
    %v167 = vpop.f32.mrf.mxu0
    %168 = vdwg.mxu0
    %v169 = vmax.f32 %v161, -5.0
    %v170 = vmax.f32 %v166, -5.0
    %v171 = vmin.f32 %v169, 5.0
    %v172 = vmin.f32 %v170, 5.0
    %v173 = vmul.f32 %v171, 1.442695
    %v174 = vpow.pop %v173
    %v175 = vmul.f32 %v172, 1.442695
    %v176 = vpow.pop %v175
    %v177 = vmul.f32 %v174, %v79
    %v178 = vmul.f32 %v176, %v80
    %v179 = vld [vmem:[#allocation2] sm:$0xff]
    %v180 = vld [vmem:[#allocation2 + $0x8] sm:$0xff]
    %v182 = vsel %vm81, %v177, 0
    %v185 = vsel %vm81, %v178, 0
    %187 = vmatprep.subr.mxu0 0.0
    %188 = vmatpush1.msra.mxu0 0.0
    %189 = vmatprep.subr.mxu0 0.0
    %190 = vmatpush1.msra.mxu0 0.0
    %191 = vmatprep.subr.mxu0 0.0
    %192 = vmatpush1.msra.mxu0 0.0
    %193 = vmatprep.subr.mxu0 0.0
    %194 = vmatpush1.msra.mxu0 0.0
    %195 = vmatprep.subr.mxu0 0.0
    %196 = vmatpush1.msra.mxu0 0.0
    %197 = vmatprep.subr.mxu0 0.0
    %198 = vmatpush1.msra.mxu0 0.0
    %199 = vmatprep.subr.mxu0 0.0
    %200 = vmatpush1.msra.mxu0 0.0
    %201 = vmatprep.subr.mxu0 0.0
    %202 = vmatpush1.msra.mxu0 0.0
    %203 = vmatprep.subr.mxu0 0.0
    %204 = vmatpush1.msra.mxu0 0.0
    %205 = vmatprep.subr.mxu0 0.0
    %206 = vmatpush1.msra.mxu0 0.0
    %207 = vmatprep.subr.mxu0 0.0
    %208 = vmatpush1.msra.mxu0 0.0
    %209 = vmatprep.subr.mxu0 0.0
    %210 = vmatpush1.msra.mxu0 0.0
    %211 = vmatprep.subr.mxu0 0.0
    %212 = vmatpush1.msra.mxu0 0.0
    %213 = vmatprep.subr.mxu0 0.0
    %214 = vmatpush1.msra.mxu0 0.0
    %215 = vmatprep.subr.mxu0 0.0
    %216 = vmatpush1.msra.mxu0 %v74
    %217 = vmatprep.subr.mxu0 0.0
    %218 = vmatpush1.msra.mxu0 %v73
    %219 = vmatprep.subr.mxu0 0.0
    %220 = vmatpush2.msra.mxu0 0.0
    %221 = vmatprep.subr.mxu0 0.0
    %222 = vmatpush2.msra.mxu0 0.0
    %223 = vmatprep.subr.mxu0 0.0
    %224 = vmatpush2.msra.mxu0 0.0
    %225 = vmatprep.subr.mxu0 0.0
    %226 = vmatpush2.msra.mxu0 0.0
    %227 = vmatprep.subr.mxu0 0.0
    %228 = vmatpush2.msra.mxu0 0.0
    %229 = vmatprep.subr.mxu0 0.0
    %230 = vmatpush2.msra.mxu0 0.0
    %231 = vmatprep.subr.mxu0 0.0
    %232 = vmatpush2.msra.mxu0 0.0
    %233 = vmatprep.subr.mxu0 0.0
    %234 = vmatpush2.msra.mxu0 0.0
    %235 = vmatprep.subr.mxu0 0.0
    %236 = vmatpush2.msra.mxu0 0.0
    %237 = vmatprep.subr.mxu0 0.0
    %238 = vmatpush2.msra.mxu0 0.0
    %239 = vmatprep.subr.mxu0 0.0
    %240 = vmatpush2.msra.mxu0 0.0
    %241 = vmatprep.subr.mxu0 0.0
    %242 = vmatpush2.msra.mxu0 0.0
    %243 = vmatprep.subr.mxu0 0.0
    %244 = vmatpush2.msra.mxu0 0.0
    %245 = vmatprep.subr.mxu0 0.0
    %246 = vmatpush2.msra.mxu0 0.0
    %247 = vmatprep.subr.mxu0 0.0
    %248 = vmatpush2.msra.mxu0 0.0
    %249 = vmatprep.subr.mxu0 0.0
    %250 = vmatpush2.msra.mxu0 0.0
    %251 = vmatprep.mubr.f32.mxu0 0.0
    %252 = vmatmul.mubr.f32.gmra.mxu0 %v182
    %v253 = vpop.f32.mrf.mxu0
    %v254 = vadd.f32 0.0, %v253
    %v255 = vpop.f32.mrf.mxu0
    %256 = vmatprep.mubr.f32.mxu0 0.0
    %257 = vmatmul.mubr.f32.gmra.mxu0 %v185
    %v258 = vpop.f32.mrf.mxu0
    %v259 = vadd.f32 0.0, %v258
    %v260 = vpop.f32.mrf.mxu0
    %261 = vdwg.mxu0
    %v262 = vadd.f32 %v179, %v254
    %v263 = vadd.f32 %v180, %v259
    %264 = vst.msk [vmem:[#allocation2] sm:$0xff] %vm81, %v262
    %265 = vst.msk [vmem:[#allocation2 + $0x8] sm:$0xff] %vm81, %v263
    %v266 = vld [vmem:[#allocation3] sm:$0xff]
    %v267 = vld [vmem:[#allocation3 + $0x8] sm:$0xff]
    %v268 = vsel %vm81, %v177, 0.0
    %269 = vadd.xlane.f32.xlu0 %v268
    %v270 = vpop.xlane.xlu0 %269
    %v271 = vsel %vm81, %v178, 0.0
    %272 = vadd.xlane.f32.xlu0 %v271
    %v273 = vpop.xlane.xlu0 %272
    %v274 = vadd.f32 %v266, %v270
    %v275 = vadd.f32 %v267, %v273
    %vm276 = vcmask 7168
    %277 = vst.msk [vmem:[#allocation3] sm:$0xff] %vm276, %v274
    %278 = vst.msk [vmem:[#allocation3 + $0x8] sm:$0xff] %vm276, %v275
    %279 = vrot.lane.b32.xlu0 %v69, 112
    %v280 = vpop.permute.xlu0 %279
    %281 = vrot.lane.b32.xlu0 %v70, 112
    %v282 = vpop.permute.xlu0 %281
    %283 = vrot.lane.b32.xlu0 %v71, 112
    %v284 = vpop.permute.xlu0 %283
    %285 = vrot.lane.b32.xlu0 %v72, 112
    %v286 = vpop.permute.xlu0 %285
    %v287 = vsel %vm81, %v280, 0
    %v289 = vsel %vm81, %v282, 0
    %v291 = vsel %vm81, %v284, 0
    %v293 = vsel %vm81, %v286, 0
    %295 = vmatprep.subr.mxu0 0.0
    %296 = vmatpush1.xpose.msra.mxu0 0.0
    %297 = vmatprep.subr.mxu0 0.0
    %298 = vmatpush1.xpose.msra.mxu0 0.0
    %299 = vmatprep.subr.mxu0 0.0
    %300 = vmatpush1.xpose.msra.mxu0 0.0
    %301 = vmatprep.subr.mxu0 0.0
    %302 = vmatpush1.xpose.msra.mxu0 0.0
    %303 = vmatprep.subr.mxu0 0.0
    %304 = vmatpush1.xpose.msra.mxu0 0.0
    %305 = vmatprep.subr.mxu0 0.0
    %306 = vmatpush1.xpose.msra.mxu0 0.0
    %307 = vmatprep.subr.mxu0 0.0
    %308 = vmatpush1.xpose.msra.mxu0 0.0
    %309 = vmatprep.subr.mxu0 0.0
    %310 = vmatpush1.xpose.msra.mxu0 0.0
    %311 = vmatprep.subr.mxu0 0.0
    %312 = vmatpush1.xpose.msra.mxu0 0.0
    %313 = vmatprep.subr.mxu0 0.0
    %314 = vmatpush1.xpose.msra.mxu0 0.0
    %315 = vmatprep.subr.mxu0 0.0
    %316 = vmatpush1.xpose.msra.mxu0 0.0
    %317 = vmatprep.subr.mxu0 0.0
    %318 = vmatpush1.xpose.msra.mxu0 0.0
    %319 = vmatprep.subr.mxu0 0.0
    %320 = vmatpush1.xpose.msra.mxu0 0.0
    %321 = vmatprep.subr.mxu0 0.0
    %322 = vmatpush1.xpose.msra.mxu0 0.0
    %323 = vmatprep.subr.mxu0 0.0
    %324 = vmatpush1.xpose.msra.mxu0 %v293
    %325 = vmatprep.subr.mxu0 0.0
    %326 = vmatpush1.xpose.msra.mxu0 %v291
    %327 = vmatprep.subr.mxu0 0.0
    %328 = vmatpush2.xpose.msra.mxu0 0.0
    %329 = vmatprep.subr.mxu0 0.0
    %330 = vmatpush2.xpose.msra.mxu0 0.0
    %331 = vmatprep.subr.mxu0 0.0
    %332 = vmatpush2.xpose.msra.mxu0 0.0
    %333 = vmatprep.subr.mxu0 0.0
    %334 = vmatpush2.xpose.msra.mxu0 0.0
    %335 = vmatprep.subr.mxu0 0.0
    %336 = vmatpush2.xpose.msra.mxu0 0.0
    %337 = vmatprep.subr.mxu0 0.0
    %338 = vmatpush2.xpose.msra.mxu0 0.0
    %339 = vmatprep.subr.mxu0 0.0
    %340 = vmatpush2.xpose.msra.mxu0 0.0
    %341 = vmatprep.subr.mxu0 0.0
    %342 = vmatpush2.xpose.msra.mxu0 0.0
    %343 = vmatprep.subr.mxu0 0.0
    %344 = vmatpush2.xpose.msra.mxu0 0.0
    %345 = vmatprep.subr.mxu0 0.0
    %346 = vmatpush2.xpose.msra.mxu0 0.0
    %347 = vmatprep.subr.mxu0 0.0
    %348 = vmatpush2.xpose.msra.mxu0 0.0
    %349 = vmatprep.subr.mxu0 0.0
    %350 = vmatpush2.xpose.msra.mxu0 0.0
    %351 = vmatprep.subr.mxu0 0.0
    %352 = vmatpush2.xpose.msra.mxu0 0.0
    %353 = vmatprep.subr.mxu0 0.0
    %354 = vmatpush2.xpose.msra.mxu0 0.0
    %355 = vmatprep.subr.mxu0 0.0
    %356 = vmatpush2.xpose.msra.mxu0 0.0
    %357 = vmatprep.subr.mxu0 0.0
    %358 = vmatpush2.xpose.msra.mxu0 0.0
    %359 = vmatprep.mubr.f32.mxu0 0.0
    %360 = vmatmul.mubr.f32.gmra.mxu0 %v287
    %v361 = vpop.f32.mrf.mxu0
    %v362 = vadd.f32 0.0, %v361
    %v363 = vpop.f32.mrf.mxu0
    %364 = vmatprep.mubr.f32.mxu0 0.0
    %365 = vmatmul.mubr.f32.gmra.mxu0 %v289
    %v366 = vpop.f32.mrf.mxu0
    %v367 = vadd.f32 0.0, %v366
    %v368 = vpop.f32.mrf.mxu0
    %369 = vdwg.mxu0
    %v370 = vmax.f32 %v362, -5.0
    %v371 = vmax.f32 %v367, -5.0
    %v372 = vmin.f32 %v370, 5.0
    %v373 = vmin.f32 %v371, 5.0
    %v374 = vmul.f32 %v372, 1.442695
    %v375 = vpow.pop %v374
    %v376 = vmul.f32 %v373, 1.442695
    %v377 = vpow.pop %v376
    %v378 = vmul.f32 %v375, %v79
    %v379 = vmul.f32 %v377, %v80
    %v380 = vld [vmem:[#allocation2] sm:$0xff]
    %v381 = vld [vmem:[#allocation2 + $0x8] sm:$0xff]
    %384 = vrot.lane.b32.xlu0 %v73, 112
    %v385 = vpop.permute.xlu0 %384
    %386 = vrot.lane.b32.xlu0 %v74, 112
    %v387 = vpop.permute.xlu0 %386
    %v391 = vsel %vm81, %v378, 0
    %v394 = vsel %vm81, %v379, 0
    %396 = vmatprep.subr.mxu0 0.0
    %397 = vmatpush1.msra.mxu0 0.0
    %398 = vmatprep.subr.mxu0 0.0
    %399 = vmatpush1.msra.mxu0 0.0
    %400 = vmatprep.subr.mxu0 0.0
    %401 = vmatpush1.msra.mxu0 0.0
    %402 = vmatprep.subr.mxu0 0.0
    %403 = vmatpush1.msra.mxu0 0.0
    %404 = vmatprep.subr.mxu0 0.0
    %405 = vmatpush1.msra.mxu0 0.0
    %406 = vmatprep.subr.mxu0 0.0
    %407 = vmatpush1.msra.mxu0 0.0
    %408 = vmatprep.subr.mxu0 0.0
    %409 = vmatpush1.msra.mxu0 0.0
    %410 = vmatprep.subr.mxu0 0.0
    %411 = vmatpush1.msra.mxu0 0.0
    %412 = vmatprep.subr.mxu0 0.0
    %413 = vmatpush1.msra.mxu0 0.0
    %414 = vmatprep.subr.mxu0 0.0
    %415 = vmatpush1.msra.mxu0 0.0
    %416 = vmatprep.subr.mxu0 0.0
    %417 = vmatpush1.msra.mxu0 0.0
    %418 = vmatprep.subr.mxu0 0.0
    %419 = vmatpush1.msra.mxu0 0.0
    %420 = vmatprep.subr.mxu0 0.0
    %421 = vmatpush1.msra.mxu0 0.0
    %422 = vmatprep.subr.mxu0 0.0
    %423 = vmatpush1.msra.mxu0 0.0
    %424 = vmatprep.subr.mxu0 0.0
    %425 = vmatpush1.msra.mxu0 %v387
    %426 = vmatprep.subr.mxu0 0.0
    %427 = vmatpush1.msra.mxu0 %v385
    %428 = vmatprep.subr.mxu0 0.0
    %429 = vmatpush2.msra.mxu0 0.0
    %430 = vmatprep.subr.mxu0 0.0
    %431 = vmatpush2.msra.mxu0 0.0
    %432 = vmatprep.subr.mxu0 0.0
    %433 = vmatpush2.msra.mxu0 0.0
    %434 = vmatprep.subr.mxu0 0.0
    %435 = vmatpush2.msra.mxu0 0.0
    %436 = vmatprep.subr.mxu0 0.0
    %437 = vmatpush2.msra.mxu0 0.0
    %438 = vmatprep.subr.mxu0 0.0
    %439 = vmatpush2.msra.mxu0 0.0
    %440 = vmatprep.subr.mxu0 0.0
    %441 = vmatpush2.msra.mxu0 0.0
    %442 = vmatprep.subr.mxu0 0.0
    %443 = vmatpush2.msra.mxu0 0.0
    %444 = vmatprep.subr.mxu0 0.0
    %445 = vmatpush2.msra.mxu0 0.0
    %446 = vmatprep.subr.mxu0 0.0
    %447 = vmatpush2.msra.mxu0 0.0
    %448 = vmatprep.subr.mxu0 0.0
    %449 = vmatpush2.msra.mxu0 0.0
    %450 = vmatprep.subr.mxu0 0.0
    %451 = vmatpush2.msra.mxu0 0.0
    %452 = vmatprep.subr.mxu0 0.0
    %453 = vmatpush2.msra.mxu0 0.0
    %454 = vmatprep.subr.mxu0 0.0
    %455 = vmatpush2.msra.mxu0 0.0
    %456 = vmatprep.subr.mxu0 0.0
    %457 = vmatpush2.msra.mxu0 0.0
    %458 = vmatprep.subr.mxu0 0.0
    %459 = vmatpush2.msra.mxu0 0.0
    %460 = vmatprep.mubr.f32.mxu0 0.0
    %461 = vmatmul.mubr.f32.gmra.mxu0 %v391
    %v462 = vpop.f32.mrf.mxu0
    %v463 = vadd.f32 0.0, %v462
    %v464 = vpop.f32.mrf.mxu0
    %465 = vmatprep.mubr.f32.mxu0 0.0
    %466 = vmatmul.mubr.f32.gmra.mxu0 %v394
    %v467 = vpop.f32.mrf.mxu0
    %v468 = vadd.f32 0.0, %v467
    %v469 = vpop.f32.mrf.mxu0
    %470 = vdwg.mxu0
    %473 = vrot.lane.b32.xlu0 %v463, 16
    %v474 = vpop.permute.xlu0 %473
    %475 = vrot.lane.b32.xlu0 %v468, 16
    %v476 = vpop.permute.xlu0 %475
    %v479 = vadd.f32 %v380, %v474
    %v480 = vadd.f32 %v381, %v476
    %vm481 = vcmask 261248
    %482 = vst.msk [vmem:[#allocation2] sm:$0xff] %vm481, %v479
    %483 = vst.msk [vmem:[#allocation2 + $0x8] sm:$0xff] %vm481, %v480
    %v484 = vld [vmem:[#allocation3] sm:$0xff]
    %v485 = vld [vmem:[#allocation3 + $0x8] sm:$0xff]
    %v486 = vsel %vm81, %v378, 0.0
    %487 = vadd.xlane.f32.xlu0 %v486
    %v488 = vpop.xlane.xlu0 %487
    %v489 = vsel %vm81, %v379, 0.0
    %490 = vadd.xlane.f32.xlu0 %v489
    %v491 = vpop.xlane.xlu0 %490
    %v492 = vadd.f32 %v484, %v488
    %v493 = vadd.f32 %v485, %v491
    %vm494 = vcmask 15368
    %495 = vst.msk [vmem:[#allocation3] sm:$0xff] %vm494, %v492
    %496 = vst.msk [vmem:[#allocation3 + $0x8] sm:$0xff] %vm494, %v493
    %497 = vrot.lane.b32.xlu0 %v69, 96
    %v498 = vpop.permute.xlu0 %497
    %499 = vrot.lane.b32.xlu0 %v70, 96
    %v500 = vpop.permute.xlu0 %499
    %501 = vrot.lane.b32.xlu0 %v71, 96
    %v502 = vpop.permute.xlu0 %501
    %503 = vrot.lane.b32.xlu0 %v72, 96
    %v504 = vpop.permute.xlu0 %503
    %v505 = vsel %vm81, %v498, 0
    %v507 = vsel %vm81, %v500, 0
    %v509 = vsel %vm81, %v502, 0
    %v511 = vsel %vm81, %v504, 0
    %513 = vmatprep.subr.mxu0 0.0
    %514 = vmatpush1.xpose.msra.mxu0 0.0
    %515 = vmatprep.subr.mxu0 0.0
    %516 = vmatpush1.xpose.msra.mxu0 0.0
    %517 = vmatprep.subr.mxu0 0.0
    %518 = vmatpush1.xpose.msra.mxu0 0.0
    %519 = vmatprep.subr.mxu0 0.0
    %520 = vmatpush1.xpose.msra.mxu0 0.0
    %521 = vmatprep.subr.mxu0 0.0
    %522 = vmatpush1.xpose.msra.mxu0 0.0
    %523 = vmatprep.subr.mxu0 0.0
    %524 = vmatpush1.xpose.msra.mxu0 0.0
    %525 = vmatprep.subr.mxu0 0.0
    %526 = vmatpush1.xpose.msra.mxu0 0.0
    %527 = vmatprep.subr.mxu0 0.0
    %528 = vmatpush1.xpose.msra.mxu0 0.0
    %529 = vmatprep.subr.mxu0 0.0
    %530 = vmatpush1.xpose.msra.mxu0 0.0
    %531 = vmatprep.subr.mxu0 0.0
    %532 = vmatpush1.xpose.msra.mxu0 0.0
    %533 = vmatprep.subr.mxu0 0.0
    %534 = vmatpush1.xpose.msra.mxu0 0.0
    %535 = vmatprep.subr.mxu0 0.0
    %536 = vmatpush1.xpose.msra.mxu0 0.0
    %537 = vmatprep.subr.mxu0 0.0
    %538 = vmatpush1.xpose.msra.mxu0 0.0
    %539 = vmatprep.subr.mxu0 0.0
    %540 = vmatpush1.xpose.msra.mxu0 0.0
    %541 = vmatprep.subr.mxu0 0.0
    %542 = vmatpush1.xpose.msra.mxu0 %v511
    %543 = vmatprep.subr.mxu0 0.0
    %544 = vmatpush1.xpose.msra.mxu0 %v509
    %545 = vmatprep.subr.mxu0 0.0
    %546 = vmatpush2.xpose.msra.mxu0 0.0
    %547 = vmatprep.subr.mxu0 0.0
    %548 = vmatpush2.xpose.msra.mxu0 0.0
    %549 = vmatprep.subr.mxu0 0.0
    %550 = vmatpush2.xpose.msra.mxu0 0.0
    %551 = vmatprep.subr.mxu0 0.0
    %552 = vmatpush2.xpose.msra.mxu0 0.0
    %553 = vmatprep.subr.mxu0 0.0
    %554 = vmatpush2.xpose.msra.mxu0 0.0
    %555 = vmatprep.subr.mxu0 0.0
    %556 = vmatpush2.xpose.msra.mxu0 0.0
    %557 = vmatprep.subr.mxu0 0.0
    %558 = vmatpush2.xpose.msra.mxu0 0.0
    %559 = vmatprep.subr.mxu0 0.0
    %560 = vmatpush2.xpose.msra.mxu0 0.0
    %561 = vmatprep.subr.mxu0 0.0
    %562 = vmatpush2.xpose.msra.mxu0 0.0
    %563 = vmatprep.subr.mxu0 0.0
    %564 = vmatpush2.xpose.msra.mxu0 0.0
    %565 = vmatprep.subr.mxu0 0.0
    %566 = vmatpush2.xpose.msra.mxu0 0.0
    %567 = vmatprep.subr.mxu0 0.0
    %568 = vmatpush2.xpose.msra.mxu0 0.0
    %569 = vmatprep.subr.mxu0 0.0
    %570 = vmatpush2.xpose.msra.mxu0 0.0
    %571 = vmatprep.subr.mxu0 0.0
    %572 = vmatpush2.xpose.msra.mxu0 0.0
    %573 = vmatprep.subr.mxu0 0.0
    %574 = vmatpush2.xpose.msra.mxu0 0.0
    %575 = vmatprep.subr.mxu0 0.0
    %576 = vmatpush2.xpose.msra.mxu0 0.0
    %577 = vmatprep.mubr.f32.mxu0 0.0
    %578 = vmatmul.mubr.f32.gmra.mxu0 %v505
    %v579 = vpop.f32.mrf.mxu0
    %v580 = vadd.f32 0.0, %v579
    %v581 = vpop.f32.mrf.mxu0
    %582 = vmatprep.mubr.f32.mxu0 0.0
    %583 = vmatmul.mubr.f32.gmra.mxu0 %v507
    %v584 = vpop.f32.mrf.mxu0
    %v585 = vadd.f32 0.0, %v584
    %v586 = vpop.f32.mrf.mxu0
    %587 = vdwg.mxu0
    %v588 = vmax.f32 %v580, -5.0
    %v589 = vmax.f32 %v585, -5.0
    %v590 = vmin.f32 %v588, 5.0
    %v591 = vmin.f32 %v589, 5.0
    %v592 = vmul.f32 %v590, 1.442695
    %v593 = vpow.pop %v592
    %v594 = vmul.f32 %v591, 1.442695
    %v595 = vpow.pop %v594
    %v596 = vmul.f32 %v593, %v79
    %v597 = vmul.f32 %v595, %v80
    %v598 = vld [vmem:[#allocation2] sm:$0xff]
    %v599 = vld [vmem:[#allocation2 + $0x8] sm:$0xff]
    %600 = vrot.lane.b32.xlu0 %v73, 96
    %v601 = vpop.permute.xlu0 %600
    %602 = vrot.lane.b32.xlu0 %v74, 96
    %v603 = vpop.permute.xlu0 %602
    %v607 = vsel %vm81, %v596, 0
    %v610 = vsel %vm81, %v597, 0
    %612 = vmatprep.subr.mxu0 0.0
    %613 = vmatpush1.msra.mxu0 0.0
    %614 = vmatprep.subr.mxu0 0.0
    %615 = vmatpush1.msra.mxu0 0.0
    %616 = vmatprep.subr.mxu0 0.0
    %617 = vmatpush1.msra.mxu0 0.0
    %618 = vmatprep.subr.mxu0 0.0
    %619 = vmatpush1.msra.mxu0 0.0
    %620 = vmatprep.subr.mxu0 0.0
    %621 = vmatpush1.msra.mxu0 0.0
    %622 = vmatprep.subr.mxu0 0.0
    %623 = vmatpush1.msra.mxu0 0.0
    %624 = vmatprep.subr.mxu0 0.0
    %625 = vmatpush1.msra.mxu0 0.0
    %626 = vmatprep.subr.mxu0 0.0
    %627 = vmatpush1.msra.mxu0 0.0
    %628 = vmatprep.subr.mxu0 0.0
    %629 = vmatpush1.msra.mxu0 0.0
    %630 = vmatprep.subr.mxu0 0.0
    %631 = vmatpush1.msra.mxu0 0.0
    %632 = vmatprep.subr.mxu0 0.0
    %633 = vmatpush1.msra.mxu0 0.0
    %634 = vmatprep.subr.mxu0 0.0
    %635 = vmatpush1.msra.mxu0 0.0
    %636 = vmatprep.subr.mxu0 0.0
    %637 = vmatpush1.msra.mxu0 0.0
    %638 = vmatprep.subr.mxu0 0.0
    %639 = vmatpush1.msra.mxu0 0.0
    %640 = vmatprep.subr.mxu0 0.0
    %641 = vmatpush1.msra.mxu0 %v603
    %642 = vmatprep.subr.mxu0 0.0
    %643 = vmatpush1.msra.mxu0 %v601
    %644 = vmatprep.subr.mxu0 0.0
    %645 = vmatpush2.msra.mxu0 0.0
    %646 = vmatprep.subr.mxu0 0.0
    %647 = vmatpush2.msra.mxu0 0.0
    %648 = vmatprep.subr.mxu0 0.0
    %649 = vmatpush2.msra.mxu0 0.0
    %650 = vmatprep.subr.mxu0 0.0
    %651 = vmatpush2.msra.mxu0 0.0
    %652 = vmatprep.subr.mxu0 0.0
    %653 = vmatpush2.msra.mxu0 0.0
    %654 = vmatprep.subr.mxu0 0.0
    %655 = vmatpush2.msra.mxu0 0.0
    %656 = vmatprep.subr.mxu0 0.0
    %657 = vmatpush2.msra.mxu0 0.0
    %658 = vmatprep.subr.mxu0 0.0
    %659 = vmatpush2.msra.mxu0 0.0
    %660 = vmatprep.subr.mxu0 0.0
    %661 = vmatpush2.msra.mxu0 0.0
    %662 = vmatprep.subr.mxu0 0.0
    %663 = vmatpush2.msra.mxu0 0.0
    %664 = vmatprep.subr.mxu0 0.0
    %665 = vmatpush2.msra.mxu0 0.0
    %666 = vmatprep.subr.mxu0 0.0
    %667 = vmatpush2.msra.mxu0 0.0
    %668 = vmatprep.subr.mxu0 0.0
    %669 = vmatpush2.msra.mxu0 0.0
    %670 = vmatprep.subr.mxu0 0.0
    %671 = vmatpush2.msra.mxu0 0.0
    %672 = vmatprep.subr.mxu0 0.0
    %673 = vmatpush2.msra.mxu0 0.0
    %674 = vmatprep.subr.mxu0 0.0
    %675 = vmatpush2.msra.mxu0 0.0
    %676 = vmatprep.mubr.f32.mxu0 0.0
    %677 = vmatmul.mubr.f32.gmra.mxu0 %v607
    %v678 = vpop.f32.mrf.mxu0
    %v679 = vadd.f32 0.0, %v678
    %v680 = vpop.f32.mrf.mxu0
    %681 = vmatprep.mubr.f32.mxu0 0.0
    %682 = vmatmul.mubr.f32.gmra.mxu0 %v610
    %v683 = vpop.f32.mrf.mxu0
    %v684 = vadd.f32 0.0, %v683
    %v685 = vpop.f32.mrf.mxu0
    %686 = vdwg.mxu0
    %689 = vrot.lane.b32.xlu0 %v679, 32
    %v690 = vpop.permute.xlu0 %689
    %691 = vrot.lane.b32.xlu0 %v684, 32
    %v692 = vpop.permute.xlu0 %691
    %v695 = vadd.f32 %v598, %v690
    %v696 = vadd.f32 %v599, %v692
    %vm697 = vcmask 392448
    %698 = vst.msk [vmem:[#allocation2] sm:$0xff] %vm697, %v695
    %699 = vst.msk [vmem:[#allocation2 + $0x8] sm:$0xff] %vm697, %v696
    %v700 = vld [vmem:[#allocation3] sm:$0xff]
    %v701 = vld [vmem:[#allocation3 + $0x8] sm:$0xff]
    %v702 = vsel %vm81, %v596, 0.0
    %703 = vadd.xlane.f32.xlu0 %v702
    %v704 = vpop.xlane.xlu0 %703
    %v705 = vsel %vm81, %v597, 0.0
    %706 = vadd.xlane.f32.xlu0 %v705
    %v707 = vpop.xlane.xlu0 %706
    %v708 = vadd.f32 %v700, %v704
    %v709 = vadd.f32 %v701, %v707
    %vm710 = vcmask 23568
    %711 = vst.msk [vmem:[#allocation3] sm:$0xff] %vm710, %v708
    %712 = vst.msk [vmem:[#allocation3 + $0x8] sm:$0xff] %vm710, %v709
    %713 = vrot.lane.b32.xlu0 %v69, 80
    %v714 = vpop.permute.xlu0 %713
    %715 = vrot.lane.b32.xlu0 %v70, 80
    %v716 = vpop.permute.xlu0 %715
    %717 = vrot.lane.b32.xlu0 %v71, 80
    %v718 = vpop.permute.xlu0 %717
    %719 = vrot.lane.b32.xlu0 %v72, 80
    %v720 = vpop.permute.xlu0 %719
    %v721 = vsel %vm81, %v714, 0
    %v723 = vsel %vm81, %v716, 0
    %v725 = vsel %vm81, %v718, 0
    %v727 = vsel %vm81, %v720, 0
    %729 = vmatprep.subr.mxu0 0.0
    %730 = vmatpush1.xpose.msra.mxu0 0.0
    %731 = vmatprep.subr.mxu0 0.0
    %732 = vmatpush1.xpose.msra.mxu0 0.0
    %733 = vmatprep.subr.mxu0 0.0
    %734 = vmatpush1.xpose.msra.mxu0 0.0
    %735 = vmatprep.subr.mxu0 0.0
    %736 = vmatpush1.xpose.msra.mxu0 0.0
    %737 = vmatprep.subr.mxu0 0.0
    %738 = vmatpush1.xpose.msra.mxu0 0.0
    %739 = vmatprep.subr.mxu0 0.0
    %740 = vmatpush1.xpose.msra.mxu0 0.0
    %741 = vmatprep.subr.mxu0 0.0
    %742 = vmatpush1.xpose.msra.mxu0 0.0
    %743 = vmatprep.subr.mxu0 0.0
    %744 = vmatpush1.xpose.msra.mxu0 0.0
    %745 = vmatprep.subr.mxu0 0.0
    %746 = vmatpush1.xpose.msra.mxu0 0.0
    %747 = vmatprep.subr.mxu0 0.0
    %748 = vmatpush1.xpose.msra.mxu0 0.0
    %749 = vmatprep.subr.mxu0 0.0
    %750 = vmatpush1.xpose.msra.mxu0 0.0
    %751 = vmatprep.subr.mxu0 0.0
    %752 = vmatpush1.xpose.msra.mxu0 0.0
    %753 = vmatprep.subr.mxu0 0.0
    %754 = vmatpush1.xpose.msra.mxu0 0.0
    %755 = vmatprep.subr.mxu0 0.0
    %756 = vmatpush1.xpose.msra.mxu0 0.0
    %757 = vmatprep.subr.mxu0 0.0
    %758 = vmatpush1.xpose.msra.mxu0 %v727
    %759 = vmatprep.subr.mxu0 0.0
    %760 = vmatpush1.xpose.msra.mxu0 %v725
    %761 = vmatprep.subr.mxu0 0.0
    %762 = vmatpush2.xpose.msra.mxu0 0.0
    %763 = vmatprep.subr.mxu0 0.0
    %764 = vmatpush2.xpose.msra.mxu0 0.0
    %765 = vmatprep.subr.mxu0 0.0
    %766 = vmatpush2.xpose.msra.mxu0 0.0
    %767 = vmatprep.subr.mxu0 0.0
    %768 = vmatpush2.xpose.msra.mxu0 0.0
    %769 = vmatprep.subr.mxu0 0.0
    %770 = vmatpush2.xpose.msra.mxu0 0.0
    %771 = vmatprep.subr.mxu0 0.0
    %772 = vmatpush2.xpose.msra.mxu0 0.0
    %773 = vmatprep.subr.mxu0 0.0
    %774 = vmatpush2.xpose.msra.mxu0 0.0
    %775 = vmatprep.subr.mxu0 0.0
    %776 = vmatpush2.xpose.msra.mxu0 0.0
    %777 = vmatprep.subr.mxu0 0.0
    %778 = vmatpush2.xpose.msra.mxu0 0.0
    %779 = vmatprep.subr.mxu0 0.0
    %780 = vmatpush2.xpose.msra.mxu0 0.0
    %781 = vmatprep.subr.mxu0 0.0
    %782 = vmatpush2.xpose.msra.mxu0 0.0
    %783 = vmatprep.subr.mxu0 0.0
    %784 = vmatpush2.xpose.msra.mxu0 0.0
    %785 = vmatprep.subr.mxu0 0.0
    %786 = vmatpush2.xpose.msra.mxu0 0.0
    %787 = vmatprep.subr.mxu0 0.0
    %788 = vmatpush2.xpose.msra.mxu0 0.0
    %789 = vmatprep.subr.mxu0 0.0
    %790 = vmatpush2.xpose.msra.mxu0 0.0
    %791 = vmatprep.subr.mxu0 0.0
    %792 = vmatpush2.xpose.msra.mxu0 0.0
    %793 = vmatprep.mubr.f32.mxu0 0.0
    %794 = vmatmul.mubr.f32.gmra.mxu0 %v721
    %v795 = vpop.f32.mrf.mxu0
    %v796 = vadd.f32 0.0, %v795
    %v797 = vpop.f32.mrf.mxu0
    %798 = vmatprep.mubr.f32.mxu0 0.0
    %799 = vmatmul.mubr.f32.gmra.mxu0 %v723
    %v800 = vpop.f32.mrf.mxu0
    %v801 = vadd.f32 0.0, %v800
    %v802 = vpop.f32.mrf.mxu0
    %803 = vdwg.mxu0
    %v804 = vmax.f32 %v796, -5.0
    %v805 = vmax.f32 %v801, -5.0
    %v806 = vmin.f32 %v804, 5.0
    %v807 = vmin.f32 %v805, 5.0
    %v808 = vmul.f32 %v806, 1.442695
    %v809 = vpow.pop %v808
    %v810 = vmul.f32 %v807, 1.442695
    %v811 = vpow.pop %v810
    %v812 = vmul.f32 %v809, %v79
    %v813 = vmul.f32 %v811, %v80
    %v814 = vld [vmem:[#allocation2] sm:$0xff]
    %v815 = vld [vmem:[#allocation2 + $0x8] sm:$0xff]
    %816 = vrot.lane.b32.xlu0 %v73, 80
    %v817 = vpop.permute.xlu0 %816
    %818 = vrot.lane.b32.xlu0 %v74, 80
    %v819 = vpop.permute.xlu0 %818
    %v823 = vsel %vm81, %v812, 0
    %v826 = vsel %vm81, %v813, 0
    %828 = vmatprep.subr.mxu0 0.0
    %829 = vmatpush1.msra.mxu0 0.0
    %830 = vmatprep.subr.mxu0 0.0
    %831 = vmatpush1.msra.mxu0 0.0
    %832 = vmatprep.subr.mxu0 0.0
    %833 = vmatpush1.msra.mxu0 0.0
    %834 = vmatprep.subr.mxu0 0.0
    %835 = vmatpush1.msra.mxu0 0.0
    %836 = vmatprep.subr.mxu0 0.0
    %837 = vmatpush1.msra.mxu0 0.0
    %838 = vmatprep.subr.mxu0 0.0
    %839 = vmatpush1.msra.mxu0 0.0
    %840 = vmatprep.subr.mxu0 0.0
    %841 = vmatpush1.msra.mxu0 0.0
    %842 = vmatprep.subr.mxu0 0.0
    %843 = vmatpush1.msra.mxu0 0.0
    %844 = vmatprep.subr.mxu0 0.0
    %845 = vmatpush1.msra.mxu0 0.0
    %846 = vmatprep.subr.mxu0 0.0
    %847 = vmatpush1.msra.mxu0 0.0
    %848 = vmatprep.subr.mxu0 0.0
    %849 = vmatpush1.msra.mxu0 0.0
    %850 = vmatprep.subr.mxu0 0.0
    %851 = vmatpush1.msra.mxu0 0.0
    %852 = vmatprep.subr.mxu0 0.0
    %853 = vmatpush1.msra.mxu0 0.0
    %854 = vmatprep.subr.mxu0 0.0
    %855 = vmatpush1.msra.mxu0 0.0
    %856 = vmatprep.subr.mxu0 0.0
    %857 = vmatpush1.msra.mxu0 %v819
    %858 = vmatprep.subr.mxu0 0.0
    %859 = vmatpush1.msra.mxu0 %v817
    %860 = vmatprep.subr.mxu0 0.0
    %861 = vmatpush2.msra.mxu0 0.0
    %862 = vmatprep.subr.mxu0 0.0
    %863 = vmatpush2.msra.mxu0 0.0
    %864 = vmatprep.subr.mxu0 0.0
    %865 = vmatpush2.msra.mxu0 0.0
    %866 = vmatprep.subr.mxu0 0.0
    %867 = vmatpush2.msra.mxu0 0.0
    %868 = vmatprep.subr.mxu0 0.0
    %869 = vmatpush2.msra.mxu0 0.0
    %870 = vmatprep.subr.mxu0 0.0
    %871 = vmatpush2.msra.mxu0 0.0
    %872 = vmatprep.subr.mxu0 0.0
    %873 = vmatpush2.msra.mxu0 0.0
    %874 = vmatprep.subr.mxu0 0.0
    %875 = vmatpush2.msra.mxu0 0.0
    %876 = vmatprep.subr.mxu0 0.0
    %877 = vmatpush2.msra.mxu0 0.0
    %878 = vmatprep.subr.mxu0 0.0
    %879 = vmatpush2.msra.mxu0 0.0
    %880 = vmatprep.subr.mxu0 0.0
    %881 = vmatpush2.msra.mxu0 0.0
    %882 = vmatprep.subr.mxu0 0.0
    %883 = vmatpush2.msra.mxu0 0.0
    %884 = vmatprep.subr.mxu0 0.0
    %885 = vmatpush2.msra.mxu0 0.0
    %886 = vmatprep.subr.mxu0 0.0
    %887 = vmatpush2.msra.mxu0 0.0
    %888 = vmatprep.subr.mxu0 0.0
    %889 = vmatpush2.msra.mxu0 0.0
    %890 = vmatprep.subr.mxu0 0.0
    %891 = vmatpush2.msra.mxu0 0.0
    %892 = vmatprep.mubr.f32.mxu0 0.0
    %893 = vmatmul.mubr.f32.gmra.mxu0 %v823
    %v894 = vpop.f32.mrf.mxu0
    %v895 = vadd.f32 0.0, %v894
    %v896 = vpop.f32.mrf.mxu0
    %897 = vmatprep.mubr.f32.mxu0 0.0
    %898 = vmatmul.mubr.f32.gmra.mxu0 %v826
    %v899 = vpop.f32.mrf.mxu0
    %v900 = vadd.f32 0.0, %v899
    %v901 = vpop.f32.mrf.mxu0
    %902 = vdwg.mxu0
    %905 = vrot.lane.b32.xlu0 %v895, 48
    %v906 = vpop.permute.xlu0 %905
    %907 = vrot.lane.b32.xlu0 %v900, 48
    %v908 = vpop.permute.xlu0 %907
    %v911 = vadd.f32 %v814, %v906
    %v912 = vadd.f32 %v815, %v908
    %vm913 = vcmask 523648
    %914 = vst.msk [vmem:[#allocation2] sm:$0xff] %vm913, %v911
    %915 = vst.msk [vmem:[#allocation2 + $0x8] sm:$0xff] %vm913, %v912
    %v916 = vld [vmem:[#allocation3] sm:$0xff]
    %v917 = vld [vmem:[#allocation3 + $0x8] sm:$0xff]
    %v918 = vsel %vm81, %v812, 0.0
    %919 = vadd.xlane.f32.xlu0 %v918
    %v920 = vpop.xlane.xlu0 %919
    %v921 = vsel %vm81, %v813, 0.0
    %922 = vadd.xlane.f32.xlu0 %v921
    %v923 = vpop.xlane.xlu0 %922
    %v924 = vadd.f32 %v916, %v920
    %v925 = vadd.f32 %v917, %v923
    %vm926 = vcmask 31768
    %927 = vst.msk [vmem:[#allocation3] sm:$0xff] %vm926, %v924
    %928 = vst.msk [vmem:[#allocation3 + $0x8] sm:$0xff] %vm926, %v925
    // Predicated region
    $region34: #{tpu_custom_call.1} parent=1 // pred_check
      %p929 = pneg %p59
    $region35: #{tpu_custom_call.1} parent=1 // pred_check_branch
      %931 = sbr.rel (%p929) target = $region37
    $region36: #{tpu_custom_call.1} parent=1 // pred_region
      %v932 = vld [vmem:[#allocation3] sm:$0xff]
      %v933 = vld [vmem:[#allocation3 + $0x8] sm:$0xff]
      %v934 = vrcp.pop %v932
      %v935 = vrcp.pop %v933
      %v936 = vld [vmem:[#allocation2] sm:$0xff]
      %v937 = vld [vmem:[#allocation2 + $0x8] sm:$0xff]
      %939 = vset.pattern.permute.xlu0 0
      %940 = vperm.xlu0 %939, %v934
      %v941 = vpop.permute.xlu0 %940
      %944 = vset.pattern.permute.xlu0 0
      %945 = vperm.xlu0 %944, %v935
      %v946 = vpop.permute.xlu0 %945
      %v948 = vmul.f32 %v936, %v941
      %v949 = vmul.f32 %v937, %v946
      %950 = vst.msk [vmem:[#allocation10] sm:$0xff] %vm81, %v948
      %951 = vst.msk [vmem:[#allocation10 + $0x8] sm:$0xff] %vm81, %v949
      %v952 = vld [vmem:[#allocation3] sm:$0xff]
      %v953 = vld [vmem:[#allocation3 + $0x8] sm:$0xff]
      %v954 = vrcp.pop %v952
      %v955 = vrcp.pop %v953
      %v956 = vld [vmem:[#allocation2] sm:$0xff]
      %v957 = vld [vmem:[#allocation2 + $0x8] sm:$0xff]
      %959 = vset.pattern.permute.xlu0 1
      %960 = vperm.xlu0 %959, %v954
      %v961 = vpop.permute.xlu0 %960
      %964 = vset.pattern.permute.xlu0 1
      %965 = vperm.xlu0 %964, %v955
      %v966 = vpop.permute.xlu0 %965
      %v968 = vmul.f32 %v956, %v961
      %v969 = vmul.f32 %v957, %v966
      %970 = vst.msk [vmem:[#allocation10] sm:$0xff] %vm481, %v968
      %971 = vst.msk [vmem:[#allocation10 + $0x8] sm:$0xff] %vm481, %v969
      %v972 = vld [vmem:[#allocation3] sm:$0xff]
      %v973 = vld [vmem:[#allocation3 + $0x8] sm:$0xff]
      %v974 = vrcp.pop %v972
      %v975 = vrcp.pop %v973
      %v976 = vld [vmem:[#allocation2] sm:$0xff]
      %v977 = vld [vmem:[#allocation2 + $0x8] sm:$0xff]
      %979 = vset.pattern.permute.xlu0 2
      %980 = vperm.xlu0 %979, %v974
      %v981 = vpop.permute.xlu0 %980
      %984 = vset.pattern.permute.xlu0 2
      %985 = vperm.xlu0 %984, %v975
      %v986 = vpop.permute.xlu0 %985
      %v988 = vmul.f32 %v976, %v981
      %v989 = vmul.f32 %v977, %v986
      %990 = vst.msk [vmem:[#allocation10] sm:$0xff] %vm697, %v988
      %991 = vst.msk [vmem:[#allocation10 + $0x8] sm:$0xff] %vm697, %v989
      %v992 = vld [vmem:[#allocation3] sm:$0xff]
      %v993 = vld [vmem:[#allocation3 + $0x8] sm:$0xff]
      %v994 = vrcp.pop %v992
      %v995 = vrcp.pop %v993
      %v996 = vld [vmem:[#allocation2] sm:$0xff]
      %v997 = vld [vmem:[#allocation2 + $0x8] sm:$0xff]
      %999 = vset.pattern.permute.xlu0 3
      %1000 = vperm.xlu0 %999, %v994
      %v1001 = vpop.permute.xlu0 %1000
      %1004 = vset.pattern.permute.xlu0 3
      %1005 = vperm.xlu0 %1004, %v995
      %v1006 = vpop.permute.xlu0 %1005
      %v1008 = vmul.f32 %v996, %v1001
      %v1009 = vmul.f32 %v997, %v1006
      %1010 = vst.msk [vmem:[#allocation10] sm:$0xff] %vm913, %v1008
      %1011 = vst.msk [vmem:[#allocation10 + $0x8] sm:$0xff] %vm913, %v1009
    $region37: #{tpu_custom_call.1} parent=1 // pred_fallthru
      _
    // Predicated region
    $region38: #{tpu_custom_call.1} parent=1 // pred_check
      _
    $region39: #{tpu_custom_call.1} parent=1 // pred_check_branch
      %1013 = sbr.rel (0) target = $region41
    $region40: #{tpu_custom_call.1} parent=1 // pred_region
      %s1015 = ssub.s32 256, 256
      %1016 = vsyncadd [#allocation6], %s1015
      %s1017 = sshll.u32 [#allocation10], 4
      %s1018 = int_to_ptr.vmem [resolvable:$true] %s1017
      %1023 = dma.vmem_to_hbm [thread:$0]  %s1018, 256, %s4, [#allocation6], 128, 128, 8
    $region41: #{tpu_custom_call.1} parent=1 // pred_fallthru
      _
    // Predicated region
    $region42: #{tpu_custom_call.1} parent=1 // pred_check
      _
    $region43: #{tpu_custom_call.1} parent=1 // pred_check_branch
      %1025 = sbr.rel (0) target = $region45
    $region44: #{tpu_custom_call.1} parent=1 // pred_region
      %1026 = dma.done [#allocation6], 256
    $region45: #{tpu_custom_call.1} parent=1 // pred_fallthru
      _
    %1027 = vsyncpa [#allocation5], 1
    %1028 = vsyncpa [#allocation8], 1
    %1029 = vsyncpa [#allocation6], 1

</llo_original>
